<compile_context>
chip_gen: v5e
topology: v5e:2x2
jax: 0.10.0
libtpu: 0.0.40
codegen_flags: <defaults>
</compile_context>

<pallas_src>
import functools

import jax
import jax.numpy as jnp
from jax.experimental import pallas as pl
from jax.experimental.pallas import tpu as pltpu


# ---------------------------------------------------------------------------
# Pallas kernel: (Cout, K) x (K, tm) -> (Cout, tm) per grid step (MXU path).
# Output lane axis = tm (a multiple of 128) -> full, unmasked vector stores.
# ---------------------------------------------------------------------------
def _conv_gemm_kernel(w_ref, p_ref, o_ref):
    o_ref[...] = jnp.dot(
        w_ref[...], p_ref[...], preferred_element_type=jnp.float32
    ).astype(o_ref.dtype)


def _im2col_T(x, k, stride, padding, dilation):
    """Transposed im2col: (K, M) with K ordered (Cin, kh, kw), M = (N, OH, OW)."""
    N, C, H, W = x.shape
    xp = jnp.pad(x, ((0, 0), (0, 0), (padding, padding), (padding, padding)))
    OH = (H + 2 * padding - dilation * (k - 1) - 1) // stride + 1
    OW = (W + 2 * padding - dilation * (k - 1) - 1) // stride + 1
    taps = []
    for kh in range(k):
        for kw in range(k):
            taps.append(xp[
                :, :,
                kh * dilation: kh * dilation + stride * OH: stride,
                kw * dilation: kw * dilation + stride * OW: stride,
            ])  # (N, C, OH, OW)
    # (k*k, N, C, OH, OW) -> (C, k*k, N, OH, OW) -> (C*k*k, N*OH*OW)
    # K ordering (Cin, kh, kw) matches PyTorch's weight.reshape(Cout, -1).
    p = jnp.stack(taps, axis=0)
    p = p.transpose(2, 0, 1, 3, 4).reshape(C * k * k, N * OH * OW)
    return p, OH, OW


def _choose_row_tile(m_padded, cap=2048):
    """Largest 128-multiple tile <= cap; keep >=2 blocks when possible (v7x: 2 TCs)."""
    tm = min(m_padded, cap)
    if m_padded // tm < 2 and m_padded >= 256:
        tm = max(128, (m_padded // 2 // 128) * 128)
    return tm


@functools.partial(
    jax.jit,
    static_argnames=("stride", "padding", "dilation", "compute_dtype", "tile_cap"),
)
def aug_conv2d_forward(x, weight, stride=1, padding=0, dilation=1,
                       compute_dtype=jnp.bfloat16, tile_cap=2048):
    """Forward of aug_Conv2d (prob=None, bias=False). x: NCHW."""
    # gaussian_augment(weight, prob=None, var=1) is an identity op (module default).
    N, Cin, H, W = x.shape
    Cout, _, k, _ = weight.shape

    patches_T, OH, OW = _im2col_T(x, k, stride, padding, dilation)   # (K, M)
    K, M = patches_T.shape
    w2d = weight.reshape(Cout, K)                                    # (Cout, K)

    # Lane-dense row tiling of M.
    M128 = pl.cdiv(M, 128) * 128
    tm = _choose_row_tile(M128, tile_cap)
    Mp = pl.cdiv(M, tm) * tm
    if Mp != M:
        # Same jit as the im2col fusion -> XLA folds this pad into the producer.
        patches_T = jnp.pad(patches_T, ((0, 0), (0, Mp - M)))

    # bf16 operands (MXU-native), f32 accumulation inside the kernel.
    patches_T = patches_T.astype(compute_dtype)
    w2d = w2d.astype(compute_dtype)

    in_bytes = jnp.dtype(compute_dtype).itemsize
    cost = pl.CostEstimate(
        flops=2 * Mp * K * Cout,
        transcendentals=0,
        bytes_accessed=(Mp * K + Cout * K) * in_bytes + Cout * Mp * x.dtype.itemsize,
    )

    out_t = pl.pallas_call(
        _conv_gemm_kernel,
        out_shape=jax.ShapeDtypeStruct((Cout, Mp), x.dtype),
        grid_spec=pltpu.PrefetchScalarGridSpec(
            num_scalar_prefetch=0,
            grid=(Mp // tm,),
            in_specs=[
                pl.BlockSpec((Cout, K), lambda i: (0, 0)),   # full weight (tiny)
                pl.BlockSpec((K, tm), lambda i: (0, i)),     # patch column tile
            ],
            out_specs=pl.BlockSpec((Cout, tm), lambda i: (0, i)),
        ),
        compiler_params=pltpu.CompilerParams(
            dimension_semantics=("parallel",),
        ),
        cost_estimate=cost,
    )(w2d, patches_T)

    # (Cout, Mp) -> (Cout, N, OH, OW) -> NCHW; slice/reshape/transpose fused by XLA.
    out = out_t[:, :M].reshape(Cout, N, OH, OW).transpose(1, 0, 2, 3)
    return out


if __name__ == "__main__":
    # Module config: aug_Conv2d(in_channels=4, out_channels=8, kernel_size=3,
    #                           stride=1, padding=1, dilation=1, bias=False)
    in_channels, out_channels, kernel_size = 4, 8, 3
    stride, padding, dilation = 1, 1, 1

    key = jax.random.PRNGKey(0)
    kw_, kx_ = jax.random.split(key)
    # weight ~ torch.randn(out, in, k, k)
    weight = jax.random.normal(
        kw_, (out_channels, in_channels, kernel_size, kernel_size), jnp.float32
    )
    x = jax.random.normal(kx_, (2, 4, 16, 16), jnp.float32)  # NCHW

    y = aug_conv2d_forward(x, weight, stride=stride, padding=padding,
                           dilation=dilation)
    y = jax.block_until_ready(y)

    # Reference with the same operand precision as the kernel's MXU path
    # (bf16 operands, f32 accumulation); semantics of F.conv2d otherwise.
    y_ref = jax.lax.conv_general_dilated(
        x.astype(jnp.bfloat16), weight.astype(jnp.bfloat16),
        window_strides=(stride, stride),
        padding=[(padding, padding), (padding, padding)],
        rhs_dilation=(dilation, dilation),
        dimension_numbers=("NCHW", "OIHW", "NCHW"),
        preferred_element_type=jnp.float32,
    )
    assert y.shape == y_ref.shape, (y.shape, y_ref.shape)
    assert jnp.allclose(y, y_ref, atol=2e-2, rtol=2e-2), float(
        jnp.max(jnp.abs(y - y_ref))
    )

    print("KERNEL_OK")
</pallas_src>

<mosaic_0001>
module attributes {stable_mosaic.version = 11 : i64} {
  func.func @_conv_gemm_kernel(%arg0: i32, %arg1: memref<8x36xbf16, #tpu.memory_space<vmem>>, %arg2: memref<36x256xbf16, #tpu.memory_space<vmem>>, %arg3: memref<8x256xf32, #tpu.memory_space<vmem>>) attributes {dimension_semantics = [#tpu.dimension_semantics<parallel>], iteration_bounds = array<i64: 2>, scalar_prefetch = 0 : i64, scratch_operands = 0 : i64, tpu.core_type = #tpu.core_type<tc>, window_params = [{pipeline_mode = #tpu.pipeline_mode<synchronous>, transform_indices = @transform_0, window_bounds = array<i64: 8, 36>}, {transform_indices = @transform_1, window_bounds = array<i64: 36, 256>}, {transform_indices = @transform_2, window_bounds = array<i64: 8, 256>}]} {
    %c0 = arith.constant 0 : index
    %c0_0 = arith.constant 0 : index
    %0 = vector.load %arg1[%c0, %c0_0] : memref<8x36xbf16, #tpu.memory_space<vmem>>, vector<8x36xbf16>
    %c0_1 = arith.constant 0 : index
    %c0_2 = arith.constant 0 : index
    %1 = vector.load %arg2[%c0_1, %c0_2] : memref<36x256xbf16, #tpu.memory_space<vmem>>, vector<36x256xbf16>
    %cst = arith.constant dense<0.000000e+00> : vector<8x256xf32>
    %2 = tpu.matmul %0, %1, %cst {dimension_numbers = #tpu.dot_dimension_numbers<[1], [0], [0], [1], [0, 0, 1, 1], [], []>} : vector<8x36xbf16>, vector<36x256xbf16>, vector<8x256xf32> -> vector<8x256xf32>
    %c0_3 = arith.constant 0 : index
    %c0_4 = arith.constant 0 : index
    %3 = vector.load %arg3[%c0_3, %c0_4] : memref<8x256xf32, #tpu.memory_space<vmem>>, vector<8x256xf32>
    tpu.vector_store %arg3[%c0_3, %c0_4], %2 {strides = array<i32>} : memref<8x256xf32, #tpu.memory_space<vmem>>, vector<8x256xf32>,
    return
  }
  func.func @transform_0(%arg0: i32) -> (i32, i32) {
    %c0_i32 = arith.constant 0 : i32
    %c0_i32_0 = arith.constant 0 : i32
    %c0_i32_1 = arith.constant 0 : i32
    return %c0_i32, %c0_i32_0 : i32, i32
  }
  func.func @transform_1(%arg0: i32) -> (i32, i32) {
    %c0_i32 = arith.constant 0 : i32
    %c0_i32_0 = arith.constant 0 : i32
    return %c0_i32, %arg0 : i32, i32
  }
  func.func @transform_2(%arg0: i32) -> (i32, i32) {
    %c0_i32 = arith.constant 0 : i32
    %c0_i32_0 = arith.constant 0 : i32
    return %c0_i32, %arg0 : i32, i32
  }
}

</mosaic_0001>

<llo_original>
// kernel: aug_conv2d_forward.1
$region0: #{aug_conv2d_forward.1}
  #allocation0 [shape = 'u32[]', space=smem, size = 0x4, offset = 0x4, fixed_abs, tag = 'smem constant byte address 0x4 - core index']
  #allocation1 [shape = 'u32[72,128]{1,0:T(1,128)}', space=vmem, size = 0x9000, scoped, tag = 'internal scratch']
  %s0 = inlined_call_operand.vmem [shape: bf16[8,36], index: 0, kind: input, shape index: {}]
  %s1 = inlined_call_operand.vmem [shape: bf16[36,512], index: 1, kind: input, shape index: {}]
  %s2 = inlined_call_operand.vmem [shape: f32[8,512], index: 2, kind: output, shape index: {}]
  %s3 = sld [smem:[#allocation0]]
  $region79: #{aug_conv2d_forward.1} parent=0
    _
  %s5 = ssub.s32 1, %s3
  %s6 = scalar_select 0, %s5, %s3
  $region1: #{aug_conv2d_forward.1} parent=0
    #allocation2 [shape = 'u8[40960]{0}', space=vmem, size = 0xa000, scoped, tag = 'input window, operand 1']
    loop: start=0, step=1, limit=4
    $region2: #{aug_conv2d_forward.1} parent=1 // loop_pre_header
      _
    $region3: #{aug_conv2d_forward.1} parent=1 // loop_header
      %s8 = sphi 0, %s12
      %p9 = scmp.ge.s32.totalorder %s8, 4
      %s16 = sphi 0, %s16
      %s18 = sphi 0, %s16
      %s19 = sphi 0, %s18
      %s33 = sphi 0, %s19
      %s39 = sphi 0, %s41
      %s42 = sphi 0, %s39
      %s43 = sphi 0, %s42
      %s59 = sphi 0, %s43
      %s65 = sphi 0, %s67
      %s68 = sphi 0, %s65
      %s69 = sphi 0, %s68
      %s85 = sphi 0, %s69
    $region4: #{aug_conv2d_forward.1} parent=1 // loop_header_branch
      %11 = sbr.rel (%p9) target = $region8
    $region5: #{aug_conv2d_forward.1} parent=1 // loop_body
      %s13 = ssub.s32 %s8, 1
      %s14 = ssub.s32 %s8, 2
      %s15 = sadd.s32 %s8, 1
      %s17 = sadd.s32 %s16, 1
      %p20 = scmp.eq.s32.totalorder %s8, 1
      %p21 = scmp.ne.s32.totalorder %s16, %s18
      %p22 = scmp.eq.s32.totalorder %s8, 0
      %p23 = por %p21, %p22
      %p24 = scmp.ne.s32.totalorder %s16, %s18
      %p25 = scmp.eq.s32.totalorder %s13, 1
      %p26 = por %p24, %p25
      %p27 = scmp.ne.s32.totalorder %s18, %s19
      %p28 = scmp.eq.s32.totalorder %s13, 0
      %p29 = por %p27, %p28
      %p30 = scmp.ne.s32.totalorder %s18, %s19
      %p31 = scmp.eq.s32.totalorder %s14, 1
      %p32 = por %p30, %p31
      %p34 = scmp.ne.s32.totalorder %s19, %s33
      %p35 = scmp.eq.s32.totalorder %s14, 0
      %p36 = por %p34, %p35
      %s37 = ssub.s32 %s8, %s15
      %p38 = scmp.eq.s32.totalorder %s37, 0
      %s40 = sadd.s32 %s39, 1
      %s41 = scalar_select %p38, %s39, %s40
      %p44 = pneg %p38
      %p45 = scmp.eq.s32.totalorder %s8, 1
      %p46 = por %p44, %p45
      %p47 = scmp.ne.s32.totalorder %s39, %s42
      %p48 = scmp.eq.s32.totalorder %s8, 0
      %p49 = por %p47, %p48
      %p50 = scmp.ne.s32.totalorder %s39, %s42
      %p51 = scmp.eq.s32.totalorder %s13, 1
      %p52 = por %p50, %p51
      %p53 = scmp.ne.s32.totalorder %s42, %s43
      %p54 = scmp.eq.s32.totalorder %s13, 0
      %p55 = por %p53, %p54
      %p56 = scmp.ne.s32.totalorder %s42, %s43
      %p57 = scmp.eq.s32.totalorder %s14, 1
      %p58 = por %p56, %p57
      %p60 = scmp.ne.s32.totalorder %s43, %s59
      %p61 = scmp.eq.s32.totalorder %s14, 0
      %p62 = por %p60, %p61
      %s63 = ssub.s32 %s8, %s15
      %p64 = scmp.eq.s32.totalorder %s63, 0
      %s66 = sadd.s32 %s65, 1
      %s67 = scalar_select %p64, %s65, %s66
      %p70 = pneg %p64
      %p71 = scmp.eq.s32.totalorder %s8, 1
      %p72 = por %p70, %p71
      %p73 = scmp.ne.s32.totalorder %s65, %s68
      %p74 = scmp.eq.s32.totalorder %s8, 0
      %p75 = por %p73, %p74
      %p76 = scmp.ne.s32.totalorder %s65, %s68
      %p77 = scmp.eq.s32.totalorder %s13, 1
      %p78 = por %p76, %p77
      %p79 = scmp.ne.s32.totalorder %s68, %s69
      %p80 = scmp.eq.s32.totalorder %s13, 0
      %p81 = por %p79, %p80
      %p82 = scmp.ne.s32.totalorder %s68, %s69
      %p83 = scmp.eq.s32.totalorder %s14, 1
      %p84 = por %p82, %p83
      %p86 = scmp.ne.s32.totalorder %s69, %s85
      %p87 = scmp.eq.s32.totalorder %s14, 0
      %p88 = por %p86, %p87
      %p89 = scmp.le.s32.totalorder 1, %s8
      %p90 = scmp.lt.s32.totalorder %s8, 3
      %p91 = pnand %p89, %p90
      %p92 = pneg %p91
      // Predicated region
      $region9: #{aug_conv2d_forward.1} parent=5 // pred_check
        _
      $region10: #{aug_conv2d_forward.1} parent=5 // pred_check_branch
        %94 = sbr.rel (%p91) target = $region12
      $region11: #{aug_conv2d_forward.1} parent=5 // pred_region
        %s95 = ssub.s32 %s8, 1
        // Predicated region
        $region13: #{aug_conv2d_forward.1} parent=11 // pred_check
          %p96 = pneg %p29
        $region14: #{aug_conv2d_forward.1} parent=11 // pred_check_branch
          %98 = sbr.rel (%p96) target = $region16
        $region15: #{aug_conv2d_forward.1} parent=11 // pred_region
          _
        $region16: #{aug_conv2d_forward.1} parent=11 // pred_fallthru
          _
      $region12: #{aug_conv2d_forward.1} parent=5 // pred_fallthru
        _
      %p99 = scmp.lt.s32.totalorder %s8, 2
      // Predicated region
      $region17: #{aug_conv2d_forward.1} parent=5 // pred_check
        %p100 = pneg %p99
      $region18: #{aug_conv2d_forward.1} parent=5 // pred_check_branch
        %102 = sbr.rel (%p100) target = $region20
      $region19: #{aug_conv2d_forward.1} parent=5 // pred_region
        // Predicated region
        $region21: #{aug_conv2d_forward.1} parent=19 // pred_check
          %p103 = pneg %p49
        $region22: #{aug_conv2d_forward.1} parent=19 // pred_check_branch
          %105 = sbr.rel (%p103) target = $region24
        $region23: #{aug_conv2d_forward.1} parent=19 // pred_region
          %s106 = sand.u32 %s39, 1
          %s107 = sand.u32 %s39, 1
          %s108 = smul.addr %s107, 40
          %s109 = scalar_lea.vmem [#allocation2], %s108
          %s110 = smul.u32 2, %s8
          %s111 = smul.addr %s110, 4
          %s112 = scalar_lea.vmem %s1, %s111
          // Predicated region
          $region25: #{aug_conv2d_forward.1} parent=23 // pred_check
            _
          $region26: #{aug_conv2d_forward.1} parent=23 // pred_check_branch
            %114 = sbr.rel (0) target = $region28
          $region27: #{aug_conv2d_forward.1} parent=23 // pred_region
            // Predicated region
            $region29: #{aug_conv2d_forward.1} parent=27 // pred_check
              _
            $region30: #{aug_conv2d_forward.1} parent=27 // pred_check_branch
              %116 = sbr.rel (0) target = $region32
            $region31: #{aug_conv2d_forward.1} parent=27 // pred_region
              // Predicated region
              $region44: #{aug_conv2d_forward.1} parent=31 // pred_check
                _
              $region45: #{aug_conv2d_forward.1} parent=31 // pred_check_branch
                %140 = sbr.rel (0) target = $region47
              $region46: #{aug_conv2d_forward.1} parent=31 // pred_region
                loop: start=0, step=1, limit=1
                $region48: #{aug_conv2d_forward.1} parent=46 // loop_pre_header
                  _
                $region49: #{aug_conv2d_forward.1} parent=46 // loop_header
                  %s142 = sphi 0, %s146
                  %p143 = scmp.ge.s32.totalorder %s142, 1
                  %s147 = sphi %s112, %s112
                  %s148 = sphi %s109, %s109
                $region50: #{aug_conv2d_forward.1} parent=46 // loop_header_branch
                  %145 = sbr.rel (%p143) target = $region54
                $region51: #{aug_conv2d_forward.1} parent=46 // loop_body
                  %v149 = vld [vmem:[%s147] sm:$0xff]
                  %150 = vst [vmem:[%s148] sm:$0xff] %v149
                  %v151 = vld [vmem:[%s147 + $0x10] sm:$0xff]
                  %152 = vst [vmem:[%s148 + $0x8] sm:$0xff] %v151
                  %v153 = vld [vmem:[%s147 + $0x20] sm:$0xff]
                  %154 = vst [vmem:[%s148 + $0x10] sm:$0xff] %v153
                  %v155 = vld [vmem:[%s147 + $0x30] sm:$0xff]
                  %156 = vst [vmem:[%s148 + $0x18] sm:$0xff] %v155
                  %v157 = vld [vmem:[%s147 + $0x40] sm:$0xff]
                  %158 = vst [vmem:[%s148 + $0x20] sm:$0xff] %v157
                $region52: #{aug_conv2d_forward.1} parent=46 // loop_footer
                  %s146 = sadd.s32 1, %s142
                $region53: #{aug_conv2d_forward.1} parent=46 // loop_footer_branch
                  %141 = sbr.rel target = $region49
                $region54: #{aug_conv2d_forward.1} parent=46 // loop_exit
                  _
              $region47: #{aug_conv2d_forward.1} parent=31 // pred_fallthru
                _
              // Predicated region
              $region55: #{aug_conv2d_forward.1} parent=31 // pred_check
                _
              $region56: #{aug_conv2d_forward.1} parent=31 // pred_check_branch
                %160 = sbr.rel target = $region58
              $region57: #{aug_conv2d_forward.1} parent=31 // pred_region
                _
              $region58: #{aug_conv2d_forward.1} parent=31 // pred_fallthru
                _
            $region32: #{aug_conv2d_forward.1} parent=27 // pred_fallthru
              _
            // Predicated region
            $region33: #{aug_conv2d_forward.1} parent=27 // pred_check
              _
            $region34: #{aug_conv2d_forward.1} parent=27 // pred_check_branch
              %118 = sbr.rel target = $region36
            $region35: #{aug_conv2d_forward.1} parent=27 // pred_region
              %s120 = ssub.s32 256, 1
              loop: start=0, step=1, limit=1
              $region37: #{aug_conv2d_forward.1} parent=35 // loop_pre_header
                _
              $region38: #{aug_conv2d_forward.1} parent=35 // loop_header
                %s122 = sphi 0, %s126
                %p123 = scmp.ge.s32.totalorder %s122, 1
                %s127 = sphi %s112, %s112
                %s128 = sphi %s109, %s109
              $region39: #{aug_conv2d_forward.1} parent=35 // loop_header_branch
                %125 = sbr.rel (%p123) target = $region43
              $region40: #{aug_conv2d_forward.1} parent=35 // loop_body
                %v129 = vld [vmem:[%s127] sm:%s120]
                %130 = vst [vmem:[%s128] sm:%s120] %v129
                %v131 = vld [vmem:[%s127 + $0x10] sm:%s120]
                %132 = vst [vmem:[%s128 + $0x8] sm:%s120] %v131
                %v133 = vld [vmem:[%s127 + $0x20] sm:%s120]
                %134 = vst [vmem:[%s128 + $0x10] sm:%s120] %v133
                %v135 = vld [vmem:[%s127 + $0x30] sm:%s120]
                %136 = vst [vmem:[%s128 + $0x18] sm:%s120] %v135
                %v137 = vld [vmem:[%s127 + $0x40] sm:%s120]
                %138 = vst [vmem:[%s128 + $0x20] sm:%s120] %v137
              $region41: #{aug_conv2d_forward.1} parent=35 // loop_footer
                %s126 = sadd.s32 1, %s122
              $region42: #{aug_conv2d_forward.1} parent=35 // loop_footer_branch
                %121 = sbr.rel target = $region38
              $region43: #{aug_conv2d_forward.1} parent=35 // loop_exit
                _
            $region36: #{aug_conv2d_forward.1} parent=27 // pred_fallthru
              _
          $region28: #{aug_conv2d_forward.1} parent=23 // pred_fallthru
            _
          %161 = vnop
        $region24: #{aug_conv2d_forward.1} parent=19 // pred_fallthru
          _
      $region20: #{aug_conv2d_forward.1} parent=5 // pred_fallthru
        _
      %p162 = scmp.le.s32.totalorder 1, %s8
      %p163 = scmp.lt.s32.totalorder %s8, 3
      %p164 = pnand %p162, %p163
      %p165 = pneg %p164
      // Predicated region
      $region59: #{aug_conv2d_forward.1} parent=5 // pred_check
        _
      $region60: #{aug_conv2d_forward.1} parent=5 // pred_check_branch
        %167 = sbr.rel (%p164) target = $region62
      $region61: #{aug_conv2d_forward.1} parent=5 // pred_region
        %s168 = ssub.s32 %s8, 1
        %s169 = sand.u32 %s42, 1
        %s170 = sand.u32 %s42, 1
        %s171 = smul.addr %s170, 40
        %s172 = scalar_lea.vmem [#allocation2], %s171
        // Predicated region
        $region63: #{aug_conv2d_forward.1} parent=61 // pred_check
          %p173 = pneg %p55
        $region64: #{aug_conv2d_forward.1} parent=61 // pred_check_branch
          %175 = sbr.rel (%p173) target = $region66
        $region65: #{aug_conv2d_forward.1} parent=61 // pred_region
          _
        $region66: #{aug_conv2d_forward.1} parent=61 // pred_fallthru
          _
        %p176 = pneg %p29
        %p177 = pneg %p26
        %s178 = sand.u32 %s42, 1
        %s179 = sand.u32 %s42, 1
        %s180 = smul.addr %s179, 40
        %s181 = scalar_lea.vmem [#allocation2], %s180
        %p182 = pneg %p55
        %p183 = pneg %p52
        %p184 = pneg %p81
        %p185 = pneg %p78
        %s186 = smul.u32 2, %s13
        %p187 = scmp.lt.s32.totalorder %s186, 3
        %s188 = scalar_select %p187, %s186, 3
        %s189 = smul.addr %s188, 8
        %s190 = scalar_lea.vmem %s2, %s189
        %s191 = smul.u32 2, %s13
        %s192 = smul.u32 2, %s13
        %p193 = scmp.lt.s32.totalorder %s192, 3
        %s194 = scalar_select %p193, %s192, 3
        %s195 = smul.addr %s194, 8
        %s196 = scalar_lea.vmem %s2, %s195
        %s197 = smul.u32 2, %s13
        %v199 = vld [vmem:[%s0] sm:$0xf]
        %v200 = vld [vmem:[%s172] sm:$0xff]
        %v201 = vld [vmem:[%s172 + $0x8] sm:$0xff]
        %v202 = vld [vmem:[%s172 + $0x10] sm:$0xff]
        %v203 = vld [vmem:[%s172 + $0x18] sm:$0xff]
        %v204 = vld [vmem:[%s172 + $0x20] sm:$0x33]
        %v210 = vunpack.c.l.b16 %v200
        %v211 = vunpack.c.h.b16 %v200
        %v212 = vunpack.c.l.b16 %v201
        %v213 = vunpack.c.h.b16 %v201
        %v214 = vunpack.c.l.b16 %v202
        %v215 = vunpack.c.h.b16 %v202
        %v216 = vunpack.c.l.b16 %v203
        %v217 = vunpack.c.h.b16 %v203
        %v218 = vunpack.c.l.b16 %v204
        %v219 = vunpack.c.h.b16 %v204
        %v220 = vpack.c.b16 %v212, %v210
        %v221 = vpack.c.b16 %v213, %v211
        %v222 = vpack.c.b16 %v216, %v214
        %v223 = vpack.c.b16 %v217, %v215
        %v224 = vpack.c.b16 %v218, %v218
        %v225 = vpack.c.b16 %v219, %v219
        %vm230 = vcmask 293888
        %v232 = vsel %vm230, %v199, 0
        %vm234 = vcmask 1041408
        %v236 = vsel %vm234, %v224, 0
        %v239 = vsel %vm234, %v225, 0
        %241 = vmatpush.bf16.msra.mxu0 0
        %242 = vmatpush.bf16.msra.mxu0 0
        %243 = vmatpush.bf16.msra.mxu0 0
        %244 = vmatpush.bf16.msra.mxu0 0
        %245 = vmatpush.bf16.msra.mxu0 0
        %246 = vmatpush.bf16.msra.mxu0 %v236
        %247 = vmatpush.bf16.msra.mxu0 %v222
        %248 = vmatpush.bf16.msra.mxu0 %v220
        %249 = vmatmul.bf16.gmra.mxu0 %v232
        %v250 = vpop.f32.mrf.mxu0
        %v251 = vadd.f32 0.0, %v250
        %v252 = vpop.f32.mrf.mxu0
        %253 = vdwg.mxu0
        %254 = vmatpush.bf16.msra.mxu0 0
        %255 = vmatpush.bf16.msra.mxu0 0
        %256 = vmatpush.bf16.msra.mxu0 0
        %257 = vmatpush.bf16.msra.mxu0 0
        %258 = vmatpush.bf16.msra.mxu0 0
        %259 = vmatpush.bf16.msra.mxu0 %v239
        %260 = vmatpush.bf16.msra.mxu0 %v223
        %261 = vmatpush.bf16.msra.mxu0 %v221
        %262 = vmatmul.bf16.gmra.mxu0 %v232
        %v263 = vpop.f32.mrf.mxu0
        %v264 = vadd.f32 0.0, %v263
        %v265 = vpop.f32.mrf.mxu0
        %266 = vdwg.mxu0
        %267 = vst [vmem:[%s196] sm:$0xff] %v251
        %268 = vst [vmem:[%s196 + $0x8] sm:$0xff] %v264
        %s269 = smul.u32 2, %s13
        %p270 = scmp.lt.s32.totalorder %s269, 3
        %s271 = scalar_select %p270, %s269, 3
        %s272 = smul.addr %s271, 8
        %s273 = scalar_lea.vmem %s2, %s272
        // Predicated region
        $region67: #{aug_conv2d_forward.1} parent=61 // pred_check
          %p274 = pneg %p78
        $region68: #{aug_conv2d_forward.1} parent=61 // pred_check_branch
          %276 = sbr.rel (%p274) target = $region70
        $region69: #{aug_conv2d_forward.1} parent=61 // pred_region
          %s277 = smul.u32 2, %s13
        $region70: #{aug_conv2d_forward.1} parent=61 // pred_fallthru
          _
      $region62: #{aug_conv2d_forward.1} parent=5 // pred_fallthru
        _
      %p278 = scmp.le.s32.totalorder 2, %s8
      // Predicated region
      $region71: #{aug_conv2d_forward.1} parent=5 // pred_check
        %p279 = pneg %p278
      $region72: #{aug_conv2d_forward.1} parent=5 // pred_check_branch
        %281 = sbr.rel (%p279) target = $region74
      $region73: #{aug_conv2d_forward.1} parent=5 // pred_region
        %s282 = ssub.s32 %s8, 2
        // Predicated region
        $region75: #{aug_conv2d_forward.1} parent=73 // pred_check
          %p283 = pneg %p84
        $region76: #{aug_conv2d_forward.1} parent=73 // pred_check_branch
          %285 = sbr.rel (%p283) target = $region78
        $region77: #{aug_conv2d_forward.1} parent=73 // pred_region
          %s286 = smul.u32 2, %s14
          %p287 = scmp.lt.s32.totalorder %s286, 3
          %s288 = scalar_select %p287, %s286, 3
          %s289 = smul.addr %s288, 8
          %s290 = scalar_lea.vmem %s2, %s289
        $region78: #{aug_conv2d_forward.1} parent=73 // pred_fallthru
          _
      $region74: #{aug_conv2d_forward.1} parent=5 // pred_fallthru
        _
    $region6: #{aug_conv2d_forward.1} parent=1 // loop_footer
      %s12 = sadd.s32 1, %s8
    $region7: #{aug_conv2d_forward.1} parent=1 // loop_footer_branch
      %7 = sbr.rel target = $region3
    $region8: #{aug_conv2d_forward.1} parent=1 // loop_exit
      _

</llo_original>
